<compile_context>
chip_gen: v7x
topology: tpu7x:2x2x1
jax: 0.10.0
libtpu: 0.0.40
codegen_flags: <defaults>
</compile_context>

<pallas_src>
import functools

import jax
import jax.numpy as jnp
from jax import lax
from jax.experimental import pallas as pl
from jax.experimental.pallas import tpu as pltpu

ALPHA = 0.5
GAMMA = 2.0

LANES = 128
SUBLANES = 8
MAX_BLOCK_ROWS = 2048   # 2048 * 128 * 4B = 1 MiB per input block
NUM_CORES = 2           # leading parallel grid axis (2 TCs on v7x; harmless elsewhere)


def _focal_loss_kernel(pred_ref, target_ref, out_ref, *, alpha, gamma,
                       block_rows, blocks_per_core, total_rows):
    c = pl.program_id(0)   # parallel (core) axis
    i = pl.program_id(1)   # arbitrary (reduction) axis

    @pl.when(i == 0)
    def _():
        out_ref[...] = jnp.zeros_like(out_ref)

    p = pred_ref[...]      # (block_rows, LANES) f32
    t = target_ref[...]    # (block_rows, LANES) f32, values in {0, 1}

    # Logical (unclamped) global row of every element. Rows >= total_rows are
    # either the ragged tail of the last real block or a fully out-of-range
    # block whose DMA index was clamped in the index_map; mask them to a
    # zero-loss value BEFORE the log so garbage lanes cannot produce NaN/inf.
    logical_block = c * blocks_per_core + i
    local_row = lax.broadcasted_iota(jnp.int32, (block_rows, LANES), 0)
    valid = (logical_block * block_rows + local_row) < total_rows

    is_one = t > 0.5
    p_sel = jnp.where(is_one, p, 1.0 - p)
    p_sel = jnp.where(valid, p_sel, jnp.float32(1.0))   # masked -> loss == 0
    a_sel = jnp.where(is_one, jnp.float32(alpha), jnp.float32(1.0 - alpha))

    om = 1.0 - p_sel
    g = float(gamma)
    if g == 2.0:
        pw = om * om                   # VPU square instead of EUP exp/log pow
    elif g == int(g) and g >= 0.0:
        pw = om ** int(g)              # integer power -> repeated multiplies
    else:
        pw = om ** jnp.float32(g)      # general (float) gamma fallback

    loss = (-a_sel) * pw * jnp.log(p_sel)

    # vreg-shaped partial sums: collapse the tile to (8, 128) with pure VPU adds
    # (layout-trivial reshape; no per-step cross-lane reduce).
    tile_partial = loss.reshape(block_rows // SUBLANES, SUBLANES, LANES).sum(axis=0)
    out_ref[...] += tile_partial[None, :, :]


def focal_loss(pred, target, alpha=ALPHA, gamma=GAMMA):
    """Pallas TPU implementation of FocalLoss.forward(pred, target) -> scalar."""
    p = pred.reshape(-1)
    t = target.reshape(-1)
    if p.dtype != jnp.float32:
        p = p.astype(jnp.float32)
    if t.dtype != jnp.float32:
        t = t.astype(jnp.float32)
    n = p.shape[0]

    # Lane-dense (rows, 128) slab. Only a tiny (<128 element) zero pad when n is
    # not a multiple of 128; zeros give p_sel = 1 -> zero loss. No full-array
    # padding copy is ever made.
    rows = pl.cdiv(n, LANES)
    pad = rows * LANES - n
    if pad:
        p = jnp.concatenate([p, jnp.zeros((pad,), jnp.float32)])
        t = jnp.concatenate([t, jnp.zeros((pad,), jnp.float32)])
    p2 = p.reshape(rows, LANES)
    t2 = t.reshape(rows, LANES)

    # Block / grid plan: large blocks, ragged row tail handled by in-kernel
    # masking. Leading axis splits the blocks across (up to) 2 TensorCores.
    block_rows = min(MAX_BLOCK_ROWS, pl.cdiv(rows, SUBLANES) * SUBLANES)
    num_blocks = pl.cdiv(rows, block_rows)
    num_cores = min(NUM_CORES, num_blocks)
    blocks_per_core = pl.cdiv(num_blocks, num_cores)

    def in_map(c, i):
        # Clamp so the DMA never targets a fully out-of-range block; the kernel
        # masks the (duplicated) data of clamped blocks to zero loss.
        return (jnp.minimum(c * blocks_per_core + i, num_blocks - 1), 0)

    kernel = functools.partial(
        _focal_loss_kernel,
        alpha=float(alpha), gamma=float(gamma),
        block_rows=block_rows, blocks_per_core=blocks_per_core, total_rows=rows)

    partials = pl.pallas_call(
        kernel,
        out_shape=jax.ShapeDtypeStruct((num_cores, SUBLANES, LANES), jnp.float32),
        grid_spec=pltpu.PrefetchScalarGridSpec(
            num_scalar_prefetch=0,
            grid=(num_cores, blocks_per_core),
            in_specs=[
                pl.BlockSpec((block_rows, LANES), in_map),
                pl.BlockSpec((block_rows, LANES), in_map),
            ],
            out_specs=pl.BlockSpec((1, SUBLANES, LANES), lambda c, i: (c, 0, 0)),
        ),
        compiler_params=pltpu.CompilerParams(
            dimension_semantics=("parallel", "arbitrary"),
            vmem_limit_bytes=32 * 1024 * 1024),
    )(p2, t2)

    # Single tiny final reduce of (num_cores, 8, 128) partials.
    return jnp.sum(partials)


def focal_loss_ref(pred, target, alpha=ALPHA, gamma=GAMMA):
    """Pure-JAX reference mirroring the PyTorch forward."""
    p = pred.reshape(-1).astype(jnp.float32)
    t = target.reshape(-1).astype(jnp.float32)
    p_sel = jnp.where(t > 0.5, p, 1.0 - p)
    a_sel = jnp.where(t > 0.5, alpha, 1.0 - alpha)
    return jnp.sum(-a_sel * (1.0 - p_sel) ** gamma * jnp.log(p_sel))


if __name__ == "__main__":
    key = jax.random.PRNGKey(0)
    keys = jax.random.split(key, 6)

    def run_case(shape, kp, kt, tol):
        pred = jax.random.uniform(kp, shape, jnp.float32, minval=0.01, maxval=0.99)
        target = (jax.random.uniform(kt, shape, jnp.float32) > 0.5).astype(jnp.float32)
        out = jax.block_until_ready(focal_loss(pred, target))
        ref = jax.block_until_ready(focal_loss_ref(pred, target))
        rel = abs(float(out) - float(ref)) / max(1.0, abs(float(ref)))
        assert rel < tol, (shape, float(out), float(ref), rel)

    # Small segmentation-style prediction map (NCHW) — single block.
    run_case((2, 4, 16, 16), keys[0], keys[1], 1e-5)
    # Ragged size (not a multiple of 8*128) — exercises in-kernel tail masking.
    run_case((3, 5, 33, 7), keys[2], keys[3], 1e-5)
    # Multi-block, odd block count — exercises the 2-core split + clamped block.
    run_case((5000, 128), keys[4], keys[5], 1e-4)

    print("KERNEL_OK")
</pallas_src>

<mosaic_0001>
module attributes {stable_mosaic.version = 11 : i64} {
  func.func @_focal_loss_kernel(%arg0: i32, %arg1: i32, %arg2: memref<16x128xf32, #tpu.memory_space<vmem>>, %arg3: memref<16x128xf32, #tpu.memory_space<vmem>>, %arg4: memref<1x8x128xf32, #tpu.memory_space<vmem>>) attributes {dimension_semantics = [#tpu.dimension_semantics<parallel>, #tpu.dimension_semantics<arbitrary>], iteration_bounds = array<i64: 1, 1>, scalar_prefetch = 0 : i64, scratch_operands = 0 : i64, tpu.core_type = #tpu.core_type<tc>, window_params = [{transform_indices = @transform_0, window_bounds = array<i64: 16, 128>}, {transform_indices = @transform_1, window_bounds = array<i64: 16, 128>}, {transform_indices = @transform_2, window_bounds = array<i64: 1, 8, 128>}]} {
    %c0_i32 = arith.constant 0 : i32
    %0 = arith.cmpi eq, %arg1, %c0_i32 : i32
    %1 = arith.extui %0 : i1 to i32
    %c0_i32_0 = arith.constant 0 : i32
    %2 = arith.cmpi ne, %1, %c0_i32_0 : i32
    scf.if %2 {
      %cst_18 = arith.constant 0.000000e+00 : f32
      %37 = vector.broadcast %cst_18 : f32 to vector<1x8x128xf32>
      %c0_19 = arith.constant 0 : index
      %c0_20 = arith.constant 0 : index
      %c0_21 = arith.constant 0 : index
      %38 = vector.load %arg4[%c0_19, %c0_20, %c0_21] : memref<1x8x128xf32, #tpu.memory_space<vmem>>, vector<1x8x128xf32>
      tpu.vector_store %arg4[%c0_19, %c0_20, %c0_21], %37 {strides = array<i32>} : memref<1x8x128xf32, #tpu.memory_space<vmem>>, vector<1x8x128xf32>,
    } else {
    }
    %c0 = arith.constant 0 : index
    %c0_1 = arith.constant 0 : index
    %3 = vector.load %arg2[%c0, %c0_1] : memref<16x128xf32, #tpu.memory_space<vmem>>, vector<16x128xf32>
    %c0_2 = arith.constant 0 : index
    %c0_3 = arith.constant 0 : index
    %4 = vector.load %arg3[%c0_2, %c0_3] : memref<16x128xf32, #tpu.memory_space<vmem>>, vector<16x128xf32>
    %c1_i32 = arith.constant 1 : i32
    %5 = arith.muli %arg0, %c1_i32 : i32
    %6 = arith.addi %5, %arg1 : i32
    %7 = tpu.iota {dimensions = array<i32: 0>} : vector<16x128xi32>
    %c16_i32 = arith.constant 16 : i32
    %8 = arith.muli %6, %c16_i32 : i32
    %9 = vector.broadcast %8 : i32 to vector<16x128xi32>
    %10 = arith.addi %9, %7 : vector<16x128xi32>
    %c16_i32_4 = arith.constant 16 : i32
    %11 = vector.broadcast %c16_i32_4 : i32 to vector<16x128xi32>
    %12 = arith.cmpi slt, %10, %11 : vector<16x128xi32>
    %cst = arith.constant 5.000000e-01 : f32
    %13 = vector.broadcast %cst : f32 to vector<16x128xf32>
    %14 = arith.cmpf ogt, %4, %13 : vector<16x128xf32>
    %cst_5 = arith.constant 1.000000e+00 : f32
    %15 = vector.broadcast %cst_5 : f32 to vector<16x128xf32>
    %16 = arith.subf %15, %3 : vector<16x128xf32>
    %17 = arith.select %14, %3, %16 : vector<16x128xi1>, vector<16x128xf32>
    %cst_6 = arith.constant 1.000000e+00 : f32
    %18 = vector.broadcast %cst_6 : f32 to vector<16x128xf32>
    %19 = arith.select %12, %17, %18 : vector<16x128xi1>, vector<16x128xf32>
    %cst_7 = arith.constant 5.000000e-01 : f32
    %cst_8 = arith.constant 5.000000e-01 : f32
    %20 = vector.broadcast %cst_7 : f32 to vector<16x128xf32>
    %21 = vector.broadcast %cst_8 : f32 to vector<16x128xf32>
    %22 = arith.select %14, %20, %21 : vector<16x128xi1>, vector<16x128xf32>
    %cst_9 = arith.constant 1.000000e+00 : f32
    %23 = vector.broadcast %cst_9 : f32 to vector<16x128xf32>
    %24 = arith.subf %23, %19 : vector<16x128xf32>
    %25 = arith.mulf %24, %24 : vector<16x128xf32>
    %cst_10 = arith.constant 0.000000e+00 : f32
    %26 = vector.broadcast %cst_10 : f32 to vector<16x128xf32>
    %27 = arith.subf %26, %22 : vector<16x128xf32>
    %28 = arith.mulf %27, %25 : vector<16x128xf32>
    %29 = math.log %19 : vector<16x128xf32>
    %30 = arith.mulf %28, %29 : vector<16x128xf32>
    %31 = vector.shape_cast %30 : vector<16x128xf32> to vector<2x8x128xf32>
    %cst_11 = arith.constant dense<0.000000e+00> : vector<8x128xf32>
    %32 = vector.multi_reduction <add>, %31, %cst_11 [0] : vector<2x8x128xf32> to vector<8x128xf32>
    %c0_12 = arith.constant 0 : index
    %c0_13 = arith.constant 0 : index
    %c0_14 = arith.constant 0 : index
    %33 = vector.load %arg4[%c0_12, %c0_13, %c0_14] : memref<1x8x128xf32, #tpu.memory_space<vmem>>, vector<1x8x128xf32>
    %34 = vector.shape_cast %32 : vector<8x128xf32> to vector<1x8x128xf32>
    %35 = arith.addf %33, %34 : vector<1x8x128xf32>
    %c0_15 = arith.constant 0 : index
    %c0_16 = arith.constant 0 : index
    %c0_17 = arith.constant 0 : index
    %36 = vector.load %arg4[%c0_15, %c0_16, %c0_17] : memref<1x8x128xf32, #tpu.memory_space<vmem>>, vector<1x8x128xf32>
    tpu.vector_store %arg4[%c0_15, %c0_16, %c0_17], %35 {strides = array<i32>} : memref<1x8x128xf32, #tpu.memory_space<vmem>>, vector<1x8x128xf32>,
    return
  }
  func.func @transform_0(%arg0: i32, %arg1: i32) -> (i32, i32) {
    %c1_i32 = arith.constant 1 : i32
    %0 = arith.muli %arg0, %c1_i32 : i32
    %1 = arith.addi %0, %arg1 : i32
    %c0_i32 = arith.constant 0 : i32
    %2 = arith.minsi %1, %c0_i32 : i32
    %c0_i32_0 = arith.constant 0 : i32
    %c0_i32_1 = arith.constant 0 : i32
    return %2, %c0_i32_0 : i32, i32
  }
  func.func @transform_1(%arg0: i32, %arg1: i32) -> (i32, i32) {
    %c1_i32 = arith.constant 1 : i32
    %0 = arith.muli %arg0, %c1_i32 : i32
    %1 = arith.addi %0, %arg1 : i32
    %c0_i32 = arith.constant 0 : i32
    %2 = arith.minsi %1, %c0_i32 : i32
    %c0_i32_0 = arith.constant 0 : i32
    %c0_i32_1 = arith.constant 0 : i32
    return %2, %c0_i32_0 : i32, i32
  }
  func.func @transform_2(%arg0: i32, %arg1: i32) -> (i32, i32, i32) {
    %c0_i32 = arith.constant 0 : i32
    %c0_i32_0 = arith.constant 0 : i32
    %c0_i32_1 = arith.constant 0 : i32
    return %arg0, %c0_i32, %c0_i32_0 : i32, i32, i32
  }
}

</mosaic_0001>

<llo_original>
// kernel: tpu_custom_call.1
$region0: #{tpu_custom_call.1}
  #allocation0 [shape = 'u32[]', space=smem, size = 0x4, offset = 0x4, fixed_abs, tag = 'smem constant byte address 0x4 - core index']
  #allocation1 [shape = 'u32[144,128]{1,0:T(1,128)}', space=vmem, size = 0x12000, scoped, tag = 'internal scratch']
  %s0 = inlined_call_operand.hbm [shape: f32[16,128], index: 0, kind: input, shape index: {}]
  %s1 = inlined_call_operand.hbm [shape: f32[16,128], index: 1, kind: input, shape index: {}]
  %s2 = inlined_call_operand.hbm [shape: f32[1,8,128], index: 2, kind: output, shape index: {}]
  %s3 = sld [smem:[#allocation0]]
  $region30: #{tpu_custom_call.1} parent=0
    _
  %s5 = ssub.s32 1, %s3
  %s6 = scalar_select 0, %s5, %s3
  $region1: #{tpu_custom_call.1} parent=0
    #allocation2 [shape = 'u8[8192]{0}', space=vmem, size = 0x2000, scoped, tag = 'input window, operand 0, single buffered']
    #allocation3 [shape = 's32[1]{0}', space=sflag, size = 0x4, scoped, tag = 'scoped memory for tpu_custom_call.1']
    #allocation4 [shape = 's32[1]{0}', space=sflag, size = 0x4, scoped, tag = 'scoped memory for tpu_custom_call.1']
    #allocation5 [shape = 'u8[8192]{0}', space=vmem, size = 0x2000, scoped, tag = 'input window, operand 1, single buffered']
    #allocation6 [shape = 's32[1]{0}', space=sflag, size = 0x4, scoped, tag = 'scoped memory for tpu_custom_call.1']
    #allocation7 [shape = 'u8[4096]{0}', space=vmem, size = 0x1000, scoped, tag = 'output window, operand 0, single buffered']
    %7 = vsyncpa [#allocation3], 0
    %8 = vsyncpa [#allocation6], 0
    %9 = vsyncpa [#allocation4], 0
    // Predicated region
    $region2: #{tpu_custom_call.1} parent=1 // pred_check
      _
    $region3: #{tpu_custom_call.1} parent=1 // pred_check_branch
      %11 = sbr.rel (0) target = $region5
    $region4: #{tpu_custom_call.1} parent=1 // pred_region
      %s12 = sadd.s32 0, 0
      %p13 = scmp.lt.s32.totalorder %s12, 0
      %s14 = scalar_select %p13, %s12, 0
      %s15 = smul.u32 2, %s14
      %s17 = ssub.s32 256, 256
      %18 = vsyncadd [#allocation3], %s17
      %s19 = smul.addr %s15, 128
      %s20 = scalar_lea.hbm %s0, %s19
      %s21 = sshll.u32 [#allocation2], 4
      %s22 = int_to_ptr.vmem [resolvable:$true] %s21
      %27 = dma.hbm_to_vmem [thread:$0]  %s20, 256, %s22, [#allocation3], 128, 128, 8
    $region5: #{tpu_custom_call.1} parent=1 // pred_fallthru
      _
    // Predicated region
    $region6: #{tpu_custom_call.1} parent=1 // pred_check
      _
    $region7: #{tpu_custom_call.1} parent=1 // pred_check_branch
      %29 = sbr.rel (0) target = $region9
    $region8: #{tpu_custom_call.1} parent=1 // pred_region
      %s30 = sadd.s32 0, 0
      %p31 = scmp.lt.s32.totalorder %s30, 0
      %s32 = scalar_select %p31, %s30, 0
      %s33 = smul.u32 2, %s32
      %s35 = ssub.s32 256, 256
      %36 = vsyncadd [#allocation6], %s35
      %s37 = smul.addr %s33, 128
      %s38 = scalar_lea.hbm %s1, %s37
      %s39 = sshll.u32 [#allocation5], 4
      %s40 = int_to_ptr.vmem [resolvable:$true] %s39
      %45 = dma.hbm_to_vmem [thread:$0]  %s38, 256, %s40, [#allocation6], 128, 128, 8
    $region9: #{tpu_custom_call.1} parent=1 // pred_fallthru
      _
    // Predicated region
    $region10: #{tpu_custom_call.1} parent=1 // pred_check
      _
    $region11: #{tpu_custom_call.1} parent=1 // pred_check_branch
      %47 = sbr.rel (0) target = $region13
    $region12: #{tpu_custom_call.1} parent=1 // pred_region
      %48 = dma.done [#allocation3], 256
    $region13: #{tpu_custom_call.1} parent=1 // pred_fallthru
      _
    // Predicated region
    $region14: #{tpu_custom_call.1} parent=1 // pred_check
      _
    $region15: #{tpu_custom_call.1} parent=1 // pred_check_branch
      %50 = sbr.rel (0) target = $region17
    $region16: #{tpu_custom_call.1} parent=1 // pred_region
      %51 = dma.done [#allocation6], 256
    $region17: #{tpu_custom_call.1} parent=1 // pred_fallthru
      _
    %s52 = sadd.s32 0, 0
    %p53 = scmp.lt.s32.totalorder %s52, 0
    %s54 = scalar_select %p53, %s52, 0
    %s55 = smul.u32 2, %s54
    %s56 = sadd.s32 0, 0
    %p57 = scmp.lt.s32.totalorder %s56, 0
    %s58 = scalar_select %p57, %s56, 0
    %s59 = smul.u32 2, %s58
    %p60 = scmp.eq.s32.totalorder 0, 0
    // Predicated region
    $region18: #{tpu_custom_call.1} parent=1 // pred_check
      %p61 = pneg %p60
    $region19: #{tpu_custom_call.1} parent=1 // pred_check_branch
      %63 = sbr.rel (%p61) target = $region21
    $region20: #{tpu_custom_call.1} parent=1 // pred_region
      %64 = vst [vmem:[#allocation7] sm:$0xff] 0.0
    $region21: #{tpu_custom_call.1} parent=1 // pred_fallthru
      _
    %v65 = vld [vmem:[#allocation2] sm:$0xff]
    %v66 = vld [vmem:[#allocation2 + $0x8] sm:$0xff]
    %v67 = vld [vmem:[#allocation5] sm:$0xff]
    %v68 = vld [vmem:[#allocation5 + $0x8] sm:$0xff]
    %s69 = sadd.s32 0, 0
    %v70 = vlaneseq
    %v71 = vshrl.u32 %v70, 7
    %v72 = vadd.s32 %v71, 8
    %s73 = smul.u32 %s69, 16
    %v74 = vstv %s73
    %v75 = vadd.s32 %v74, %v71
    %v76 = vadd.s32 %v74, %v72
    %vm77 = vcmp.lt.s32.totalorder %v75, 16
    %vm78 = vcmp.lt.s32.totalorder %v76, 16
    %vm79 = vcmp.gt.f32.partialorder %v67, 0.5
    %vm80 = vcmp.gt.f32.partialorder %v68, 0.5
    %v81 = vsub.f32 1.0, %v65
    %v82 = vsub.f32 1.0, %v66
    %v83 = vsel %vm79, %v65, %v81
    %v84 = vsel %vm80, %v66, %v82
    %v85 = vsel %vm77, %v83, 1.0
    %v86 = vsel %vm78, %v84, 1.0
    %v87 = vsub.f32 1.0, %v85
    %v88 = vsub.f32 1.0, %v86
    %v89 = vmul.f32 %v87, %v87
    %v90 = vmul.f32 %v88, %v88
    %v91 = vmul.f32 %v89, -0.5
    %v92 = vmul.f32 %v90, -0.5
    %v93 = vlog2.pop %v85
    %v94 = vmul.f32 %v93, 0.6931472
    %v95 = vlog2.pop %v86
    %v96 = vmul.f32 %v95, 0.6931472
    %v97 = vmul.f32 %v91, %v94
    %v98 = vmul.f32 %v92, %v96
    %v99 = vadd.f32 %v97, %v98
    %v100 = vld [vmem:[#allocation7] sm:$0xff]
    %v101 = vadd.f32 %v100, %v99
    %102 = vst [vmem:[#allocation7] sm:$0xff] %v101
    // Predicated region
    $region22: #{tpu_custom_call.1} parent=1 // pred_check
      _
    $region23: #{tpu_custom_call.1} parent=1 // pred_check_branch
      %104 = sbr.rel (0) target = $region25
    $region24: #{tpu_custom_call.1} parent=1 // pred_region
      %s106 = ssub.s32 128, 128
      %107 = vsyncadd [#allocation4], %s106
      %s109 = sshll.u32 [#allocation7], 4
      %s110 = int_to_ptr.vmem [resolvable:$true] %s109
      %112 = dma.vmem_to_hbm [thread:$0]  %s110, 128, %s2, [#allocation4]
    $region25: #{tpu_custom_call.1} parent=1 // pred_fallthru
      _
    // Predicated region
    $region26: #{tpu_custom_call.1} parent=1 // pred_check
      _
    $region27: #{tpu_custom_call.1} parent=1 // pred_check_branch
      %114 = sbr.rel (0) target = $region29
    $region28: #{tpu_custom_call.1} parent=1 // pred_region
      %115 = dma.done [#allocation4], 128
    $region29: #{tpu_custom_call.1} parent=1 // pred_fallthru
      _
    %116 = vsyncpa [#allocation3], 1
    %117 = vsyncpa [#allocation6], 1
    %118 = vsyncpa [#allocation4], 1

</llo_original>
